<compile_context>
chip_gen: v5e
topology: v5e:2x2
jax: 0.10.0
libtpu: 0.0.40
codegen_flags: <defaults>
</compile_context>

<pallas_src>
import functools

import jax
import jax.numpy as jnp
from jax.experimental import pallas as pl
from jax.experimental.pallas import tpu as pltpu


def cnn_block_kernel(x_ref, w1_ref, t1_ref, w2_ref, t2_ref, out_ref, *,
                     K, pad, nb):
    """Processes `nb` batch elements per grid step, each as a (C, L) tile.

    x_ref   : (nb, C, L)      input (NCL); also supplies the residual
    wX_ref  : (Cout, K*Cin)   im2col weights (BN scale folded in), tap-major
    tX_ref  : (Cout, 1)       folded conv-bias + BatchNorm shift
    out_ref : (nb, C, L)
    """
    _, C, L = out_ref.shape
    lane = jax.lax.broadcasted_iota(jnp.int32, (C, L), 1)
    mx_dtype = w1_ref.dtype            # matmul operand dtype (f32 or bf16)

    def stack_taps(a):
        # Stack the K shifted copies of `a` along the contraction (sublane) axis.
        parts = []
        for t in range(K):                     # K static -> unrolled
            d = t - pad                        # tap offset along L
            if d == 0:
                parts.append(a)
            else:
                # s[:, l] = a[:, l + d] (circular); zero the wrapped columns.
                s = pltpu.roll(a, shift=(-d) % L, axis=1)
                valid = (lane >= max(0, -d)) & (lane < L - max(0, d))
                parts.append(jnp.where(valid, s, 0.0))
        return jnp.concatenate(parts, axis=0)  # (K*C, L)

    for b in range(nb):                        # nb static -> unrolled
        x = x_ref[b].astype(jnp.float32)       # (C, L)

        # conv1 (+bias) + BN1 (folded), then ReLU
        y = jnp.dot(w1_ref[...], stack_taps(x).astype(mx_dtype),
                    preferred_element_type=jnp.float32)
        y = jnp.maximum(y + t1_ref[...], 0.0)

        # conv2 (+bias) + BN2 (folded)
        z = jnp.dot(w2_ref[...], stack_taps(y).astype(mx_dtype),
                    preferred_element_type=jnp.float32)
        z = z + t2_ref[...]

        # residual add
        out_ref[b] = (z + x).astype(out_ref.dtype)


def cnn_block_pallas(x, w1, b1, bn1, w2, b2, bn2, *, eps=1e-5, nb=1,
                     use_bf16_matmul=False):
    """x: (N, C, L) float32 (PyTorch Conv1d layout). Returns (N, C, L).

    nb              : batch elements per grid step (must divide N).
    use_bf16_matmul : cast matmul operands to bf16 (v6e/v7x MXU win); the
                      elementwise tail / residual stay in f32 (v5e-safe).
    """
    N, C, L = x.shape
    K = w1.shape[2]
    pad = (K - 1) // 2
    # TODO(synk): assumes odd kernel_size (symmetric 'same' padding) so the
    #             convs are shape-preserving, as the residual add requires.
    assert N % nb == 0, (N, nb)

    mx_dtype = jnp.bfloat16 if use_bf16_matmul else jnp.float32

    def fold(w, b, bn):
        # BN(conv(x) + b) = (s*W) conv x + (b*s + beta - m*s), s = g/sqrt(v+eps)
        g, beta, m, v = bn
        s = g / jnp.sqrt(v + eps)                             # (Cout,)
        shift = b * s + beta - m * s                          # (Cout,)
        wf = (w * s[:, None, None]).astype(jnp.float32)       # (Cout, Cin, K)
        # im2col layout, tap-major rows: W_big[o, k*Cin + i] = w[o, i, k]
        wbig = jnp.transpose(wf, (0, 2, 1)).reshape(C, K * C)
        return wbig.astype(mx_dtype), shift.reshape(C, 1).astype(jnp.float32)

    w1b, t1 = fold(w1, b1, bn1)
    w2b, t2 = fold(w2, b2, bn2)

    kernel = functools.partial(cnn_block_kernel, K=K, pad=pad, nb=nb)

    return pl.pallas_call(
        kernel,
        out_shape=jax.ShapeDtypeStruct((N, C, L), x.dtype),
        grid=(N // nb,),
        in_specs=[
            pl.BlockSpec((nb, C, L), lambda n: (n, 0, 0)),   # x (input + residual)
            pl.BlockSpec((C, K * C), lambda n: (0, 0)),      # w1 (BN-folded, im2col)
            pl.BlockSpec((C, 1), lambda n: (0, 0)),          # shift1
            pl.BlockSpec((C, K * C), lambda n: (0, 0)),      # w2 (BN-folded, im2col)
            pl.BlockSpec((C, 1), lambda n: (0, 0)),          # shift2
        ],
        out_specs=pl.BlockSpec((nb, C, L), lambda n: (n, 0, 0)),
        compiler_params=pltpu.CompilerParams(
            dimension_semantics=("parallel",)),
    )(x, w1b, t1, w2b, t2)


def cnn_block_reference(x, w1, b1, bn1, w2, b2, bn2, *, eps=1e-5):
    """Pure-JAX reference matching the PyTorch module (eval-mode BN), NCL layout."""
    K = w1.shape[2]
    pad = (K - 1) // 2

    def conv1d(h, w, b):
        out = jax.lax.conv_general_dilated(
            h, w, window_strides=(1,), padding=[(pad, pad)],
            dimension_numbers=("NCH", "OIH", "NCH"),
            precision=jax.lax.Precision.HIGHEST)
        return out + b[None, :, None]

    def bn(h, p):
        g, beta, m, v = p
        return (h - m[None, :, None]) / jnp.sqrt(v[None, :, None] + eps) \
            * g[None, :, None] + beta[None, :, None]

    y = jnp.maximum(bn(conv1d(x, w1, b1), bn1), 0.0)
    z = bn(conv1d(y, w2, b2), bn2)
    return z + x


if __name__ == "__main__":
    N, C, L, K = 2, 8, 128, 3

    key = jax.random.PRNGKey(0)
    keys = jax.random.split(key, 12)

    x = jax.random.normal(keys[0], (N, C, L), dtype=jnp.float32)

    # Conv1d params (PyTorch layout: weight (Cout, Cin, K), bias (Cout,))
    w1 = jax.random.normal(keys[1], (C, C, K), dtype=jnp.float32) * 0.2
    b1 = jax.random.normal(keys[2], (C,), dtype=jnp.float32) * 0.1
    w2 = jax.random.normal(keys[3], (C, C, K), dtype=jnp.float32) * 0.2
    b2 = jax.random.normal(keys[4], (C,), dtype=jnp.float32) * 0.1

    # BatchNorm1d params: (gamma, beta, running_mean, running_var)
    bn1 = (1.0 + 0.1 * jax.random.normal(keys[5], (C,), dtype=jnp.float32),
           0.1 * jax.random.normal(keys[6], (C,), dtype=jnp.float32),
           0.1 * jax.random.normal(keys[7], (C,), dtype=jnp.float32),
           0.5 + jnp.abs(jax.random.normal(keys[8], (C,), dtype=jnp.float32)) * 0.5)
    bn2 = (1.0 + 0.1 * jax.random.normal(keys[9], (C,), dtype=jnp.float32),
           0.1 * jax.random.normal(keys[10], (C,), dtype=jnp.float32),
           0.1 * jax.random.normal(keys[11], (C,), dtype=jnp.float32),
           0.5 + jnp.abs(jax.random.normal(keys[5], (C,), dtype=jnp.float32)) * 0.5)

    run = jax.jit(functools.partial(cnn_block_pallas))
    out = jax.block_until_ready(run(x, w1, b1, bn1, w2, b2, bn2))

    ref = jax.block_until_ready(cnn_block_reference(x, w1, b1, bn1, w2, b2, bn2))

    assert out.shape == (N, C, L), out.shape
    assert jnp.allclose(out, ref, atol=1e-3, rtol=1e-3), \
        float(jnp.max(jnp.abs(out - ref)))

    print("KERNEL_OK")
</pallas_src>

<mosaic_0001>
module attributes {stable_mosaic.version = 11 : i64} {
  func.func @cnn_block_kernel(%arg0: i32, %arg1: memref<1x8x128xf32, #tpu.memory_space<vmem>>, %arg2: memref<8x24xf32, #tpu.memory_space<vmem>>, %arg3: memref<8x1xf32, #tpu.memory_space<vmem>>, %arg4: memref<8x24xf32, #tpu.memory_space<vmem>>, %arg5: memref<8x1xf32, #tpu.memory_space<vmem>>, %arg6: memref<1x8x128xf32, #tpu.memory_space<vmem>>) attributes {dimension_semantics = [#tpu.dimension_semantics<parallel>], iteration_bounds = array<i64: 2>, scalar_prefetch = 0 : i64, scratch_operands = 0 : i64, tpu.core_type = #tpu.core_type<tc>, window_params = [{transform_indices = @transform_0, window_bounds = array<i64: 1, 8, 128>}, {pipeline_mode = #tpu.pipeline_mode<synchronous>, transform_indices = @transform_1, window_bounds = array<i64: 8, 24>}, {pipeline_mode = #tpu.pipeline_mode<synchronous>, transform_indices = @transform_2, window_bounds = array<i64: 8, 1>}, {pipeline_mode = #tpu.pipeline_mode<synchronous>, transform_indices = @transform_3, window_bounds = array<i64: 8, 24>}, {pipeline_mode = #tpu.pipeline_mode<synchronous>, transform_indices = @transform_4, window_bounds = array<i64: 8, 1>}, {transform_indices = @transform_5, window_bounds = array<i64: 1, 8, 128>}]} {
    %0 = tpu.iota {dimensions = array<i32: 1>} : vector<8x128xi32>
    %c0 = arith.constant 0 : index
    %c0_0 = arith.constant 0 : index
    %c0_1 = arith.constant 0 : index
    %1 = vector.load %arg1[%c0, %c0_0, %c0_1] : memref<1x8x128xf32, #tpu.memory_space<vmem>>, vector<1x8x128xf32>
    %2 = vector.shape_cast %1 : vector<1x8x128xf32> to vector<8x128xf32>
    %c0_2 = arith.constant 0 : index
    %c0_3 = arith.constant 0 : index
    %3 = vector.load %arg2[%c0_2, %c0_3] : memref<8x24xf32, #tpu.memory_space<vmem>>, vector<8x24xf32>
    %c1_i32 = arith.constant 1 : i32
    %4 = tpu.dynamic_rotate %2 by %c1_i32 dim 1 : vector<8x128xf32>, i32 -> vector<8x128xf32>
    %c1_i32_4 = arith.constant 1 : i32
    %5 = vector.broadcast %c1_i32_4 : i32 to vector<8x128xi32>
    %6 = arith.cmpi sge, %0, %5 : vector<8x128xi32>
    %c128_i32 = arith.constant 128 : i32
    %7 = vector.broadcast %c128_i32 : i32 to vector<8x128xi32>
    %8 = arith.cmpi slt, %0, %7 : vector<8x128xi32>
    %9 = arith.andi %6, %8 : vector<8x128xi1>
    %cst = arith.constant 0.000000e+00 : f32
    %10 = vector.broadcast %cst : f32 to vector<8x128xf32>
    %11 = arith.select %9, %4, %10 : vector<8x128xi1>, vector<8x128xf32>
    %c127_i32 = arith.constant 127 : i32
    %12 = tpu.dynamic_rotate %2 by %c127_i32 dim 1 : vector<8x128xf32>, i32 -> vector<8x128xf32>
    %c0_i32 = arith.constant 0 : i32
    %13 = vector.broadcast %c0_i32 : i32 to vector<8x128xi32>
    %14 = arith.cmpi sge, %0, %13 : vector<8x128xi32>
    %c127_i32_5 = arith.constant 127 : i32
    %15 = vector.broadcast %c127_i32_5 : i32 to vector<8x128xi32>
    %16 = arith.cmpi slt, %0, %15 : vector<8x128xi32>
    %17 = arith.andi %14, %16 : vector<8x128xi1>
    %cst_6 = arith.constant 0.000000e+00 : f32
    %18 = vector.broadcast %cst_6 : f32 to vector<8x128xf32>
    %19 = arith.select %17, %12, %18 : vector<8x128xi1>, vector<8x128xf32>
    %20 = tpu.concatenate %11, %2, %19 in 0 : vector<8x128xf32>, vector<8x128xf32>, vector<8x128xf32> -> vector<24x128xf32>
    %cst_7 = arith.constant dense<0.000000e+00> : vector<8x128xf32>
    %21 = tpu.matmul %3, %20, %cst_7 {dimension_numbers = #tpu.dot_dimension_numbers<[1], [0], [0], [1], [0, 0, 1, 1], [], []>} : vector<8x24xf32>, vector<24x128xf32>, vector<8x128xf32> -> vector<8x128xf32>
    %c0_8 = arith.constant 0 : index
    %c0_9 = arith.constant 0 : index
    %22 = vector.load %arg3[%c0_8, %c0_9] : memref<8x1xf32, #tpu.memory_space<vmem>>, vector<8x1xf32>
    %23 = vector.broadcast %22 : vector<8x1xf32> to vector<8x128xf32>
    %24 = arith.addf %21, %23 : vector<8x128xf32>
    %cst_10 = arith.constant 0.000000e+00 : f32
    %25 = vector.broadcast %cst_10 : f32 to vector<8x128xf32>
    %26 = arith.maximumf %24, %25 : vector<8x128xf32>
    %c0_11 = arith.constant 0 : index
    %c0_12 = arith.constant 0 : index
    %27 = vector.load %arg4[%c0_11, %c0_12] : memref<8x24xf32, #tpu.memory_space<vmem>>, vector<8x24xf32>
    %c1_i32_13 = arith.constant 1 : i32
    %28 = tpu.dynamic_rotate %26 by %c1_i32_13 dim 1 : vector<8x128xf32>, i32 -> vector<8x128xf32>
    %c1_i32_14 = arith.constant 1 : i32
    %29 = vector.broadcast %c1_i32_14 : i32 to vector<8x128xi32>
    %30 = arith.cmpi sge, %0, %29 : vector<8x128xi32>
    %c128_i32_15 = arith.constant 128 : i32
    %31 = vector.broadcast %c128_i32_15 : i32 to vector<8x128xi32>
    %32 = arith.cmpi slt, %0, %31 : vector<8x128xi32>
    %33 = arith.andi %30, %32 : vector<8x128xi1>
    %cst_16 = arith.constant 0.000000e+00 : f32
    %34 = vector.broadcast %cst_16 : f32 to vector<8x128xf32>
    %35 = arith.select %33, %28, %34 : vector<8x128xi1>, vector<8x128xf32>
    %c127_i32_17 = arith.constant 127 : i32
    %36 = tpu.dynamic_rotate %26 by %c127_i32_17 dim 1 : vector<8x128xf32>, i32 -> vector<8x128xf32>
    %c0_i32_18 = arith.constant 0 : i32
    %37 = vector.broadcast %c0_i32_18 : i32 to vector<8x128xi32>
    %38 = arith.cmpi sge, %0, %37 : vector<8x128xi32>
    %c127_i32_19 = arith.constant 127 : i32
    %39 = vector.broadcast %c127_i32_19 : i32 to vector<8x128xi32>
    %40 = arith.cmpi slt, %0, %39 : vector<8x128xi32>
    %41 = arith.andi %38, %40 : vector<8x128xi1>
    %cst_20 = arith.constant 0.000000e+00 : f32
    %42 = vector.broadcast %cst_20 : f32 to vector<8x128xf32>
    %43 = arith.select %41, %36, %42 : vector<8x128xi1>, vector<8x128xf32>
    %44 = tpu.concatenate %35, %26, %43 in 0 : vector<8x128xf32>, vector<8x128xf32>, vector<8x128xf32> -> vector<24x128xf32>
    %cst_21 = arith.constant dense<0.000000e+00> : vector<8x128xf32>
    %45 = tpu.matmul %27, %44, %cst_21 {dimension_numbers = #tpu.dot_dimension_numbers<[1], [0], [0], [1], [0, 0, 1, 1], [], []>} : vector<8x24xf32>, vector<24x128xf32>, vector<8x128xf32> -> vector<8x128xf32>
    %c0_22 = arith.constant 0 : index
    %c0_23 = arith.constant 0 : index
    %46 = vector.load %arg5[%c0_22, %c0_23] : memref<8x1xf32, #tpu.memory_space<vmem>>, vector<8x1xf32>
    %47 = vector.broadcast %46 : vector<8x1xf32> to vector<8x128xf32>
    %48 = arith.addf %45, %47 : vector<8x128xf32>
    %49 = arith.addf %48, %2 : vector<8x128xf32>
    %c0_24 = arith.constant 0 : index
    %c0_25 = arith.constant 0 : index
    %c0_26 = arith.constant 0 : index
    %50 = vector.load %arg6[%c0_24, %c0_25, %c0_26] : memref<1x8x128xf32, #tpu.memory_space<vmem>>, vector<1x8x128xf32>
    %51 = vector.shape_cast %50 : vector<1x8x128xf32> to vector<8x128xf32>
    %52 = vector.shape_cast %49 : vector<8x128xf32> to vector<1x8x128xf32>
    tpu.vector_store %arg6[%c0_24, %c0_25, %c0_26], %52 {strides = array<i32>} : memref<1x8x128xf32, #tpu.memory_space<vmem>>, vector<1x8x128xf32>,
    return
  }
  func.func @transform_0(%arg0: i32) -> (i32, i32, i32) {
    %c0_i32 = arith.constant 0 : i32
    %c0_i32_0 = arith.constant 0 : i32
    %c0_i32_1 = arith.constant 0 : i32
    return %arg0, %c0_i32, %c0_i32_0 : i32, i32, i32
  }
  func.func @transform_1(%arg0: i32) -> (i32, i32) {
    %c0_i32 = arith.constant 0 : i32
    %c0_i32_0 = arith.constant 0 : i32
    %c0_i32_1 = arith.constant 0 : i32
    return %c0_i32, %c0_i32_0 : i32, i32
  }
  func.func @transform_2(%arg0: i32) -> (i32, i32) {
    %c0_i32 = arith.constant 0 : i32
    %c0_i32_0 = arith.constant 0 : i32
    %c0_i32_1 = arith.constant 0 : i32
    return %c0_i32, %c0_i32_0 : i32, i32
  }
  func.func @transform_3(%arg0: i32) -> (i32, i32) {
    %c0_i32 = arith.constant 0 : i32
    %c0_i32_0 = arith.constant 0 : i32
    %c0_i32_1 = arith.constant 0 : i32
    return %c0_i32, %c0_i32_0 : i32, i32
  }
  func.func @transform_4(%arg0: i32) -> (i32, i32) {
    %c0_i32 = arith.constant 0 : i32
    %c0_i32_0 = arith.constant 0 : i32
    %c0_i32_1 = arith.constant 0 : i32
    return %c0_i32, %c0_i32_0 : i32, i32
  }
  func.func @transform_5(%arg0: i32) -> (i32, i32, i32) {
    %c0_i32 = arith.constant 0 : i32
    %c0_i32_0 = arith.constant 0 : i32
    %c0_i32_1 = arith.constant 0 : i32
    return %arg0, %c0_i32, %c0_i32_0 : i32, i32, i32
  }
}

</mosaic_0001>

<llo_original>
// kernel: cnn_block_pallas.1
$region0: #{cnn_block_pallas.1}
  #allocation0 [shape = 'u32[]', space=smem, size = 0x4, offset = 0x4, fixed_abs, tag = 'smem constant byte address 0x4 - core index']
  #allocation1 [shape = 'u32[72,128]{1,0:T(1,128)}', space=vmem, size = 0x9000, scoped, tag = 'internal scratch']
  %s0 = inlined_call_operand.vmem [shape: f32[2,8,128], index: 0, kind: input, shape index: {}]
  %s1 = inlined_call_operand.vmem [shape: f32[8,24], index: 1, kind: input, shape index: {}]
  %s2 = inlined_call_operand.vmem [shape: f32[8,1], index: 2, kind: input, shape index: {}]
  %s3 = inlined_call_operand.vmem [shape: f32[8,24], index: 3, kind: input, shape index: {}]
  %s4 = inlined_call_operand.vmem [shape: f32[8,1], index: 4, kind: input, shape index: {}]
  %s5 = inlined_call_operand.hbm [shape: f32[2,8,128], index: 5, kind: output, shape index: {}]
  %s6 = sld [smem:[#allocation0]]
  $region53: #{cnn_block_pallas.1} parent=0
    _
  %s8 = ssub.s32 1, %s6
  %s9 = scalar_select 0, %s8, %s6
  $region1: #{cnn_block_pallas.1} parent=0
    #allocation2 [shape = 'u8[8192]{0}', space=vmem, size = 0x2000, scoped, tag = 'output window, operand 0']
    #allocation3 [shape = 's32[2]{0}', space=sflag, size = 0x8, scoped, tag = 'scoped memory for cnn_block_pallas.1']
    %10 = vsyncpa [#allocation3], 0
    %s11 = scalar_lea.sflag [#allocation3], 1
    %12 = vsyncpa %s11, 0
    loop: start=0, step=1, limit=4
    $region2: #{cnn_block_pallas.1} parent=1 // loop_pre_header
      _
    $region3: #{cnn_block_pallas.1} parent=1 // loop_header
      %s14 = sphi 0, %s18
      %p15 = scmp.ge.s32.totalorder %s14, 4
      %s24 = sphi 0, %s26
      %s27 = sphi 0, %s24
      %s28 = sphi 0, %s27
      %s44 = sphi 0, %s28
      %s48 = sphi 0, %s48
      %s50 = sphi 0, %s48
      %s51 = sphi 0, %s50
      %s65 = sphi 0, %s51
      %s69 = sphi 0, %s69
      %s71 = sphi 0, %s69
      %s72 = sphi 0, %s71
      %s86 = sphi 0, %s72
      %s90 = sphi 0, %s90
      %s92 = sphi 0, %s90
      %s93 = sphi 0, %s92
      %s107 = sphi 0, %s93
      %s111 = sphi 0, %s111
      %s113 = sphi 0, %s111
      %s114 = sphi 0, %s113
      %s128 = sphi 0, %s114
      %s134 = sphi 0, %s136
      %s137 = sphi 0, %s134
      %s138 = sphi 0, %s137
      %s154 = sphi 0, %s138
    $region4: #{cnn_block_pallas.1} parent=1 // loop_header_branch
      %17 = sbr.rel (%p15) target = $region8
    $region5: #{cnn_block_pallas.1} parent=1 // loop_body
      %s19 = ssub.s32 %s14, 1
      %s20 = ssub.s32 %s14, 2
      %s21 = sadd.s32 %s14, 1
      %s22 = ssub.s32 %s14, %s21
      %p23 = scmp.eq.s32.totalorder %s22, 0
      %s25 = sadd.s32 %s24, 1
      %s26 = scalar_select %p23, %s24, %s25
      %p29 = pneg %p23
      %p30 = scmp.eq.s32.totalorder %s14, 1
      %p31 = por %p29, %p30
      %p32 = scmp.ne.s32.totalorder %s24, %s27
      %p33 = scmp.eq.s32.totalorder %s14, 0
      %p34 = por %p32, %p33
      %p35 = scmp.ne.s32.totalorder %s24, %s27
      %p36 = scmp.eq.s32.totalorder %s19, 1
      %p37 = por %p35, %p36
      %p38 = scmp.ne.s32.totalorder %s27, %s28
      %p39 = scmp.eq.s32.totalorder %s19, 0
      %p40 = por %p38, %p39
      %p41 = scmp.ne.s32.totalorder %s27, %s28
      %p42 = scmp.eq.s32.totalorder %s20, 1
      %p43 = por %p41, %p42
      %p45 = scmp.ne.s32.totalorder %s28, %s44
      %p46 = scmp.eq.s32.totalorder %s20, 0
      %p47 = por %p45, %p46
      %s49 = sadd.s32 %s48, 1
      %p52 = scmp.eq.s32.totalorder %s14, 1
      %p53 = scmp.ne.s32.totalorder %s48, %s50
      %p54 = scmp.eq.s32.totalorder %s14, 0
      %p55 = por %p53, %p54
      %p56 = scmp.ne.s32.totalorder %s48, %s50
      %p57 = scmp.eq.s32.totalorder %s19, 1
      %p58 = por %p56, %p57
      %p59 = scmp.ne.s32.totalorder %s50, %s51
      %p60 = scmp.eq.s32.totalorder %s19, 0
      %p61 = por %p59, %p60
      %p62 = scmp.ne.s32.totalorder %s50, %s51
      %p63 = scmp.eq.s32.totalorder %s20, 1
      %p64 = por %p62, %p63
      %p66 = scmp.ne.s32.totalorder %s51, %s65
      %p67 = scmp.eq.s32.totalorder %s20, 0
      %p68 = por %p66, %p67
      %s70 = sadd.s32 %s69, 1
      %p73 = scmp.eq.s32.totalorder %s14, 1
      %p74 = scmp.ne.s32.totalorder %s69, %s71
      %p75 = scmp.eq.s32.totalorder %s14, 0
      %p76 = por %p74, %p75
      %p77 = scmp.ne.s32.totalorder %s69, %s71
      %p78 = scmp.eq.s32.totalorder %s19, 1
      %p79 = por %p77, %p78
      %p80 = scmp.ne.s32.totalorder %s71, %s72
      %p81 = scmp.eq.s32.totalorder %s19, 0
      %p82 = por %p80, %p81
      %p83 = scmp.ne.s32.totalorder %s71, %s72
      %p84 = scmp.eq.s32.totalorder %s20, 1
      %p85 = por %p83, %p84
      %p87 = scmp.ne.s32.totalorder %s72, %s86
      %p88 = scmp.eq.s32.totalorder %s20, 0
      %p89 = por %p87, %p88
      %s91 = sadd.s32 %s90, 1
      %p94 = scmp.eq.s32.totalorder %s14, 1
      %p95 = scmp.ne.s32.totalorder %s90, %s92
      %p96 = scmp.eq.s32.totalorder %s14, 0
      %p97 = por %p95, %p96
      %p98 = scmp.ne.s32.totalorder %s90, %s92
      %p99 = scmp.eq.s32.totalorder %s19, 1
      %p100 = por %p98, %p99
      %p101 = scmp.ne.s32.totalorder %s92, %s93
      %p102 = scmp.eq.s32.totalorder %s19, 0
      %p103 = por %p101, %p102
      %p104 = scmp.ne.s32.totalorder %s92, %s93
      %p105 = scmp.eq.s32.totalorder %s20, 1
      %p106 = por %p104, %p105
      %p108 = scmp.ne.s32.totalorder %s93, %s107
      %p109 = scmp.eq.s32.totalorder %s20, 0
      %p110 = por %p108, %p109
      %s112 = sadd.s32 %s111, 1
      %p115 = scmp.eq.s32.totalorder %s14, 1
      %p116 = scmp.ne.s32.totalorder %s111, %s113
      %p117 = scmp.eq.s32.totalorder %s14, 0
      %p118 = por %p116, %p117
      %p119 = scmp.ne.s32.totalorder %s111, %s113
      %p120 = scmp.eq.s32.totalorder %s19, 1
      %p121 = por %p119, %p120
      %p122 = scmp.ne.s32.totalorder %s113, %s114
      %p123 = scmp.eq.s32.totalorder %s19, 0
      %p124 = por %p122, %p123
      %p125 = scmp.ne.s32.totalorder %s113, %s114
      %p126 = scmp.eq.s32.totalorder %s20, 1
      %p127 = por %p125, %p126
      %p129 = scmp.ne.s32.totalorder %s114, %s128
      %p130 = scmp.eq.s32.totalorder %s20, 0
      %p131 = por %p129, %p130
      %s132 = ssub.s32 %s14, %s21
      %p133 = scmp.eq.s32.totalorder %s132, 0
      %s135 = sadd.s32 %s134, 1
      %s136 = scalar_select %p133, %s134, %s135
      %p139 = pneg %p133
      %p140 = scmp.eq.s32.totalorder %s14, 1
      %p141 = por %p139, %p140
      %p142 = scmp.ne.s32.totalorder %s134, %s137
      %p143 = scmp.eq.s32.totalorder %s14, 0
      %p144 = por %p142, %p143
      %p145 = scmp.ne.s32.totalorder %s134, %s137
      %p146 = scmp.eq.s32.totalorder %s19, 1
      %p147 = por %p145, %p146
      %p148 = scmp.ne.s32.totalorder %s137, %s138
      %p149 = scmp.eq.s32.totalorder %s19, 0
      %p150 = por %p148, %p149
      %p151 = scmp.ne.s32.totalorder %s137, %s138
      %p152 = scmp.eq.s32.totalorder %s20, 1
      %p153 = por %p151, %p152
      %p155 = scmp.ne.s32.totalorder %s138, %s154
      %p156 = scmp.eq.s32.totalorder %s20, 0
      %p157 = por %p155, %p156
      %p158 = scmp.le.s32.totalorder 1, %s14
      %p159 = scmp.lt.s32.totalorder %s14, 3
      %p160 = pnand %p158, %p159
      %p161 = pneg %p160
      // Predicated region
      $region9: #{cnn_block_pallas.1} parent=5 // pred_check
        _
      $region10: #{cnn_block_pallas.1} parent=5 // pred_check_branch
        %163 = sbr.rel (%p160) target = $region12
      $region11: #{cnn_block_pallas.1} parent=5 // pred_region
        %s164 = ssub.s32 %s14, 1
        // Predicated region
        $region13: #{cnn_block_pallas.1} parent=11 // pred_check
          %p165 = pneg %p61
        $region14: #{cnn_block_pallas.1} parent=11 // pred_check_branch
          %167 = sbr.rel (%p165) target = $region16
        $region15: #{cnn_block_pallas.1} parent=11 // pred_region
          _
        $region16: #{cnn_block_pallas.1} parent=11 // pred_fallthru
          _
        // Predicated region
        $region17: #{cnn_block_pallas.1} parent=11 // pred_check
          %p168 = pneg %p82
        $region18: #{cnn_block_pallas.1} parent=11 // pred_check_branch
          %170 = sbr.rel (%p168) target = $region20
        $region19: #{cnn_block_pallas.1} parent=11 // pred_region
          _
        $region20: #{cnn_block_pallas.1} parent=11 // pred_fallthru
          _
        // Predicated region
        $region21: #{cnn_block_pallas.1} parent=11 // pred_check
          %p171 = pneg %p103
        $region22: #{cnn_block_pallas.1} parent=11 // pred_check_branch
          %173 = sbr.rel (%p171) target = $region24
        $region23: #{cnn_block_pallas.1} parent=11 // pred_region
          _
        $region24: #{cnn_block_pallas.1} parent=11 // pred_fallthru
          _
        // Predicated region
        $region25: #{cnn_block_pallas.1} parent=11 // pred_check
          %p174 = pneg %p124
        $region26: #{cnn_block_pallas.1} parent=11 // pred_check_branch
          %176 = sbr.rel (%p174) target = $region28
        $region27: #{cnn_block_pallas.1} parent=11 // pred_region
          _
        $region28: #{cnn_block_pallas.1} parent=11 // pred_fallthru
          _
      $region12: #{cnn_block_pallas.1} parent=5 // pred_fallthru
        _
      %p177 = scmp.lt.s32.totalorder %s14, 2
      // Predicated region
      $region29: #{cnn_block_pallas.1} parent=5 // pred_check
        %p178 = pneg %p177
      $region30: #{cnn_block_pallas.1} parent=5 // pred_check_branch
        %180 = sbr.rel (%p178) target = $region32
      $region31: #{cnn_block_pallas.1} parent=5 // pred_region
        // Predicated region
        $region33: #{cnn_block_pallas.1} parent=31 // pred_check
          %p181 = pneg %p34
        $region34: #{cnn_block_pallas.1} parent=31 // pred_check_branch
          %183 = sbr.rel (%p181) target = $region36
        $region35: #{cnn_block_pallas.1} parent=31 // pred_region
          %p184 = scmp.lt.s32.totalorder %s14, 1
          %s185 = scalar_select %p184, %s14, 1
          %s186 = smul.addr %s185, 8
          %s187 = scalar_lea.vmem %s0, %s186
        $region36: #{cnn_block_pallas.1} parent=31 // pred_fallthru
          _
      $region32: #{cnn_block_pallas.1} parent=5 // pred_fallthru
        _
      %p188 = scmp.le.s32.totalorder 1, %s14
      %p189 = scmp.lt.s32.totalorder %s14, 3
      %p190 = pnand %p188, %p189
      %p191 = pneg %p190
      // Predicated region
      $region37: #{cnn_block_pallas.1} parent=5 // pred_check
        _
      $region38: #{cnn_block_pallas.1} parent=5 // pred_check_branch
        %193 = sbr.rel (%p190) target = $region40
      $region39: #{cnn_block_pallas.1} parent=5 // pred_region
        %s194 = ssub.s32 %s14, 1
        %p195 = scmp.lt.s32.totalorder %s19, 1
        %s196 = scalar_select %p195, %s19, 1
        %s197 = smul.addr %s196, 8
        %s198 = scalar_lea.vmem %s0, %s197
        %p199 = pneg %p40
        %p200 = pneg %p37
        %p201 = pneg %p61
        %p202 = pneg %p58
        %p203 = pneg %p82
        %p204 = pneg %p79
        %p205 = pneg %p103
        %p206 = pneg %p100
        %p207 = pneg %p124
        %p208 = pneg %p121
        %p209 = pneg %p150
        %p210 = pneg %p147
        %s211 = sand.u32 %s137, 1
        %s212 = scalar_lea.sflag [#allocation3], %s211
        %s213 = sand.u32 %s137, 1
        %s214 = smul.addr %s213, 8
        %s215 = scalar_lea.vmem [#allocation2], %s214
        %p216 = scmp.lt.s32.totalorder %s19, 1
        %s217 = scalar_select %p216, %s19, 1
        %s218 = smul.addr %s217, 8
        %s219 = scalar_lea.vmem %s0, %s218
        %v220 = vlaneseq
        %v221 = vand.u32 %v220, 127
        %v222 = vld [vmem:[%s219] sm:$0xff]
        %v223 = vld [vmem:[%s1] sm:$0xff]
        %224 = vrot.lane.b32.xlu0 %v222, 1
        %v225 = vpop.permute.xlu0 %224
        %vm226 = vcmp.ge.s32.totalorder %v221, 1
        %vm227 = vcmp.lt.s32.totalorder %v221, 128
        %vm228 = vmand %vm226, %vm227
        %v229 = vsel %vm228, %v225, 0.0
        %230 = vrot.lane.b32.xlu0 %v222, 127
        %v231 = vpop.permute.xlu0 %230
        %vm232 = vcmp.ge.s32.totalorder %v221, 0
        %vm233 = vcmp.lt.s32.totalorder %v221, 127
        %vm234 = vmand %vm232, %vm233
        %v235 = vsel %vm234, %v231, 0.0
        %v236 = vld [vmem:[%s2] sm:$0xff]
        %238 = vset.pattern.permute.xlu0 0
        %239 = vperm.xlu0 %238, %v236
        %v240 = vpop.permute.xlu0 %239
        %vm242 = vcmask 195584
        %v244 = vsel %vm242, %v223, 0
        %246 = vmatpush.msra.mxu0 0.0
        %247 = vmatpush.msra.mxu0 0.0
        %248 = vmatpush.msra.mxu0 0.0
        %249 = vmatpush.msra.mxu0 0.0
        %250 = vmatpush.msra.mxu0 0.0
        %251 = vmatpush.msra.mxu0 0.0
        %252 = vmatpush.msra.mxu0 0.0
        %253 = vmatpush.msra.mxu0 0.0
        %254 = vmatpush.msra.mxu0 0.0
        %255 = vmatpush.msra.mxu0 0.0
        %256 = vmatpush.msra.mxu0 0.0
        %257 = vmatpush.msra.mxu0 0.0
        %258 = vmatpush.msra.mxu0 0.0
        %259 = vmatpush.msra.mxu0 %v235
        %260 = vmatpush.msra.mxu0 %v222
        %261 = vmatpush.msra.mxu0 %v229
        %262 = vmatmul.f32.gmra.mxu0 %v244
        %v263 = vpop.f32.mrf.mxu0
        %v264 = vadd.f32 %v240, %v263
        %265 = vdwg.mxu0
        %v266 = vmax.f32 %v264, 0.0
        %v267 = vld [vmem:[%s3] sm:$0xff]
        %268 = vrot.lane.b32.xlu0 %v266, 1
        %v269 = vpop.permute.xlu0 %268
        %v270 = vsel %vm228, %v269, 0.0
        %271 = vrot.lane.b32.xlu0 %v266, 127
        %v272 = vpop.permute.xlu0 %271
        %v273 = vsel %vm234, %v272, 0.0
        %v274 = vld [vmem:[%s4] sm:$0xff]
        %276 = vset.pattern.permute.xlu0 0
        %277 = vperm.xlu0 %276, %v274
        %v278 = vpop.permute.xlu0 %277
        %v281 = vsel %vm242, %v267, 0
        %283 = vmatpush.msra.mxu0 0.0
        %284 = vmatpush.msra.mxu0 0.0
        %285 = vmatpush.msra.mxu0 0.0
        %286 = vmatpush.msra.mxu0 0.0
        %287 = vmatpush.msra.mxu0 0.0
        %288 = vmatpush.msra.mxu0 0.0
        %289 = vmatpush.msra.mxu0 0.0
        %290 = vmatpush.msra.mxu0 0.0
        %291 = vmatpush.msra.mxu0 0.0
        %292 = vmatpush.msra.mxu0 0.0
        %293 = vmatpush.msra.mxu0 0.0
        %294 = vmatpush.msra.mxu0 0.0
        %295 = vmatpush.msra.mxu0 0.0
        %296 = vmatpush.msra.mxu0 %v273
        %297 = vmatpush.msra.mxu0 %v266
        %298 = vmatpush.msra.mxu0 %v270
        %299 = vmatmul.f32.gmra.mxu0 %v281
        %v300 = vpop.f32.mrf.mxu0
        %v301 = vadd.f32 %v278, %v300
        %302 = vdwg.mxu0
        %v303 = vadd.f32 %v301, %v222
        %304 = vst [vmem:[%s215] sm:$0xff] %v303
        %s305 = sand.u32 %s137, 1
        %s306 = scalar_lea.sflag [#allocation3], %s305
        %s307 = sand.u32 %s137, 1
        %s308 = smul.addr %s307, 8
        %s309 = scalar_lea.vmem [#allocation2], %s308
        // Predicated region
        $region41: #{cnn_block_pallas.1} parent=39 // pred_check
          %p310 = pneg %p147
        $region42: #{cnn_block_pallas.1} parent=39 // pred_check_branch
          %312 = sbr.rel (%p310) target = $region44
        $region43: #{cnn_block_pallas.1} parent=39 // pred_region
          %314 = vsyncadd %s306, 0
          %s315 = smul.addr %s19, 8
          %s316 = scalar_lea.hbm %s5, %s315
          %s318 = sshll.u32 %s309, 4
          %s319 = int_to_ptr.vmem [resolvable:$true] %s318
          %s320 = sshll.u32 %s316, 4
          %s321 = int_to_ptr.hbm [resolvable:$true] %s320
          %323 = dma.vmem_to_hbm [thread:$0]  %s319, 128, %s321, %s306
        $region44: #{cnn_block_pallas.1} parent=39 // pred_fallthru
          _
      $region40: #{cnn_block_pallas.1} parent=5 // pred_fallthru
        _
      %p324 = scmp.le.s32.totalorder 2, %s14
      // Predicated region
      $region45: #{cnn_block_pallas.1} parent=5 // pred_check
        %p325 = pneg %p324
      $region46: #{cnn_block_pallas.1} parent=5 // pred_check_branch
        %327 = sbr.rel (%p325) target = $region48
      $region47: #{cnn_block_pallas.1} parent=5 // pred_region
        %s328 = ssub.s32 %s14, 2
        // Predicated region
        $region49: #{cnn_block_pallas.1} parent=47 // pred_check
          %p329 = pneg %p153
        $region50: #{cnn_block_pallas.1} parent=47 // pred_check_branch
          %331 = sbr.rel (%p329) target = $region52
        $region51: #{cnn_block_pallas.1} parent=47 // pred_region
          %s332 = sand.u32 %s138, 1
          %s333 = scalar_lea.sflag [#allocation3], %s332
          %s334 = sand.u32 %s138, 1
          %s335 = smul.addr %s334, 8
          %s336 = scalar_lea.vmem [#allocation2], %s335
          %338 = dma.done %s333, 128
        $region52: #{cnn_block_pallas.1} parent=47 // pred_fallthru
          _
      $region48: #{cnn_block_pallas.1} parent=5 // pred_fallthru
        _
    $region6: #{cnn_block_pallas.1} parent=1 // loop_footer
      %s18 = sadd.s32 1, %s14
    $region7: #{cnn_block_pallas.1} parent=1 // loop_footer_branch
      %13 = sbr.rel target = $region3
    $region8: #{cnn_block_pallas.1} parent=1 // loop_exit
      _
    %339 = vsyncpa [#allocation3], 1
    %s340 = scalar_lea.sflag [#allocation3], 1
    %341 = vsyncpa %s340, 1

</llo_original>
